<compile_context>
chip_gen: v7x
topology: tpu7x:2x2x1
jax: 0.10.0
libtpu: 0.0.40
codegen_flags: <defaults>
</compile_context>

<pallas_src>
import jax
import jax.numpy as jnp
from jax.experimental import pallas as pl
from jax.experimental.pallas import tpu as pltpu

_EPS = 1e-6


def _qknorm_kernel(q_ref, k_ref, qs_ref, ks_ref, qo_ref, ko_ref):
    # q_ref/k_ref : (block_m, dim) VMEM tiles
    # qs_ref/ks_ref: (1, dim) resident scale rows
    # qo_ref/ko_ref: (block_m, dim) output tiles
    q = q_ref[...].astype(jnp.float32)
    k = k_ref[...].astype(jnp.float32)

    q_rrms = jax.lax.rsqrt(jnp.mean(q * q, axis=-1, keepdims=True) + _EPS)
    k_rrms = jax.lax.rsqrt(jnp.mean(k * k, axis=-1, keepdims=True) + _EPS)

    q_scale = qs_ref[...].astype(jnp.float32)
    k_scale = ks_ref[...].astype(jnp.float32)

    qo_ref[...] = (q * q_rrms * q_scale).astype(qo_ref.dtype)
    ko_ref[...] = (k * k_rrms * k_scale).astype(ko_ref.dtype)


def _pick_block_m(M):
    # Largest row tile that divides M while keeping >= 2 grid steps
    # (pipelining + both v7x TensorCores); fall back to M for tiny inputs.
    for bm in (1024, 512, 256, 128, 64, 32, 16, 8):
        if M % bm == 0 and M // bm >= 2:
            return bm
    return M


def qk_norm(q, k, q_scale, k_scale):
    """QKNorm forward.

    q, k: arrays of shape (..., dim) (e.g. (B, H, S, dim)).
    q_scale, k_scale: (dim,) RMSNorm scales.
    Returns (q_normed cast to k.dtype, k_normed cast to q.dtype).
    """
    assert q.shape == k.shape, "q and k must share a shape"
    orig_shape = q.shape
    dim = orig_shape[-1]
    assert q_scale.shape == (dim,) and k_scale.shape == (dim,)

    q2 = q.reshape(-1, dim)
    k2 = k.reshape(-1, dim)
    M = q2.shape[0]
    block_m = _pick_block_m(M)
    grid = (M // block_m,)

    qs_2d = q_scale.reshape(1, dim)
    ks_2d = k_scale.reshape(1, dim)

    q_out_dtype = k.dtype  # q.to(k)
    k_out_dtype = q.dtype  # k.to(q)

    q_out, k_out = pl.pallas_call(
        _qknorm_kernel,
        out_shape=(
            jax.ShapeDtypeStruct((M, dim), q_out_dtype),
            jax.ShapeDtypeStruct((M, dim), k_out_dtype),
        ),
        grid_spec=pltpu.PrefetchScalarGridSpec(
            num_scalar_prefetch=0,
            grid=grid,
            in_specs=[
                pl.BlockSpec((block_m, dim), lambda i: (i, 0)),  # q tile
                pl.BlockSpec((block_m, dim), lambda i: (i, 0)),  # k tile
                pl.BlockSpec((1, dim), lambda i: (0, 0)),        # q scale (resident)
                pl.BlockSpec((1, dim), lambda i: (0, 0)),        # k scale (resident)
            ],
            out_specs=[
                pl.BlockSpec((block_m, dim), lambda i: (i, 0)),
                pl.BlockSpec((block_m, dim), lambda i: (i, 0)),
            ],
        ),
        compiler_params=pltpu.CompilerParams(
            dimension_semantics=("parallel",),
        ),
    )(q2, k2, qs_2d, ks_2d)

    return q_out.reshape(orig_shape), k_out.reshape(orig_shape)


def _reference_rms_norm(x, scale, eps=_EPS):
    xf = x.astype(jnp.float32)
    rrms = jax.lax.rsqrt(jnp.mean(xf * xf, axis=-1, keepdims=True) + eps)
    return (xf * rrms * scale.astype(jnp.float32)).astype(x.dtype)


def _reference_qk_norm(q, k, q_scale, k_scale):
    qn = _reference_rms_norm(q, q_scale)
    kn = _reference_rms_norm(k, k_scale)
    return qn.astype(k.dtype), kn.astype(q.dtype)


if __name__ == "__main__":
    key = jax.random.PRNGKey(0)
    kq, kk, ksq, ksk = jax.random.split(key, 4)

    # Small but representative shapes: (batch, heads, seq, head_dim)
    # head_dim = 128 keeps the lane axis dense (no masked partial stores).
    batch, heads, seq, dim = 2, 8, 16, 128
    q = jax.random.normal(kq, (batch, heads, seq, dim), dtype=jnp.float32)
    k = jax.random.normal(kk, (batch, heads, seq, dim), dtype=jnp.float32)
    # nn.Parameter(torch.ones(dim)) at init; perturb slightly so scale matters.
    q_scale = jnp.ones((dim,), jnp.float32) + 0.1 * jax.random.normal(ksq, (dim,))
    k_scale = jnp.ones((dim,), jnp.float32) + 0.1 * jax.random.normal(ksk, (dim,))

    q_out, k_out = qk_norm(q, k, q_scale, k_scale)
    q_out, k_out = jax.block_until_ready((q_out, k_out))

    q_ref, k_ref = _reference_qk_norm(q, k, q_scale, k_scale)
    assert q_out.shape == q.shape and k_out.shape == k.shape
    assert jnp.allclose(q_out, q_ref, atol=1e-5, rtol=1e-5), "q mismatch vs reference"
    assert jnp.allclose(k_out, k_ref, atol=1e-5, rtol=1e-5), "k mismatch vs reference"

    print("KERNEL_OK")
</pallas_src>

<mosaic_0001>
module attributes {stable_mosaic.version = 11 : i64} {
  func.func @_qknorm_kernel(%arg0: i32, %arg1: memref<128x128xf32, #tpu.memory_space<vmem>>, %arg2: memref<128x128xf32, #tpu.memory_space<vmem>>, %arg3: memref<1x128xf32, #tpu.memory_space<vmem>>, %arg4: memref<1x128xf32, #tpu.memory_space<vmem>>, %arg5: memref<128x128xf32, #tpu.memory_space<vmem>>, %arg6: memref<128x128xf32, #tpu.memory_space<vmem>>) attributes {dimension_semantics = [#tpu.dimension_semantics<parallel>], iteration_bounds = array<i64: 2>, scalar_prefetch = 0 : i64, scratch_operands = 0 : i64, tpu.core_type = #tpu.core_type<tc>, window_params = [{transform_indices = @transform_0, window_bounds = array<i64: 128, 128>}, {transform_indices = @transform_1, window_bounds = array<i64: 128, 128>}, {pipeline_mode = #tpu.pipeline_mode<synchronous>, transform_indices = @transform_2, window_bounds = array<i64: 1, 128>}, {pipeline_mode = #tpu.pipeline_mode<synchronous>, transform_indices = @transform_3, window_bounds = array<i64: 1, 128>}, {transform_indices = @transform_4, window_bounds = array<i64: 128, 128>}, {transform_indices = @transform_5, window_bounds = array<i64: 128, 128>}]} {
    %c0 = arith.constant 0 : index
    %c0_0 = arith.constant 0 : index
    %0 = vector.load %arg1[%c0, %c0_0] : memref<128x128xf32, #tpu.memory_space<vmem>>, vector<128x128xf32>
    %c0_1 = arith.constant 0 : index
    %c0_2 = arith.constant 0 : index
    %1 = vector.load %arg2[%c0_1, %c0_2] : memref<128x128xf32, #tpu.memory_space<vmem>>, vector<128x128xf32>
    %2 = arith.mulf %0, %0 : vector<128x128xf32>
    %cst = arith.constant dense<0.000000e+00> : vector<128xf32>
    %3 = vector.multi_reduction <add>, %2, %cst [1] : vector<128x128xf32> to vector<128xf32>
    %4 = vector.shape_cast %3 : vector<128xf32> to vector<128x1xf32>
    %cst_3 = arith.constant 1.280000e+02 : f32
    %5 = vector.broadcast %cst_3 : f32 to vector<128x1xf32>
    %6 = arith.divf %4, %5 : vector<128x1xf32>
    %cst_4 = arith.constant 9.99999997E-7 : f32
    %7 = vector.broadcast %cst_4 : f32 to vector<128x1xf32>
    %8 = arith.addf %6, %7 : vector<128x1xf32>
    %9 = math.rsqrt %8 : vector<128x1xf32>
    %10 = arith.mulf %1, %1 : vector<128x128xf32>
    %cst_5 = arith.constant dense<0.000000e+00> : vector<128xf32>
    %11 = vector.multi_reduction <add>, %10, %cst_5 [1] : vector<128x128xf32> to vector<128xf32>
    %12 = vector.shape_cast %11 : vector<128xf32> to vector<128x1xf32>
    %cst_6 = arith.constant 1.280000e+02 : f32
    %13 = vector.broadcast %cst_6 : f32 to vector<128x1xf32>
    %14 = arith.divf %12, %13 : vector<128x1xf32>
    %cst_7 = arith.constant 9.99999997E-7 : f32
    %15 = vector.broadcast %cst_7 : f32 to vector<128x1xf32>
    %16 = arith.addf %14, %15 : vector<128x1xf32>
    %17 = math.rsqrt %16 : vector<128x1xf32>
    %c0_8 = arith.constant 0 : index
    %c0_9 = arith.constant 0 : index
    %18 = vector.load %arg3[%c0_8, %c0_9] : memref<1x128xf32, #tpu.memory_space<vmem>>, vector<1x128xf32>
    %c0_10 = arith.constant 0 : index
    %c0_11 = arith.constant 0 : index
    %19 = vector.load %arg4[%c0_10, %c0_11] : memref<1x128xf32, #tpu.memory_space<vmem>>, vector<1x128xf32>
    %20 = vector.broadcast %9 : vector<128x1xf32> to vector<128x128xf32>
    %21 = arith.mulf %0, %20 : vector<128x128xf32>
    %22 = vector.broadcast %18 : vector<1x128xf32> to vector<128x128xf32>
    %23 = arith.mulf %21, %22 : vector<128x128xf32>
    %c0_12 = arith.constant 0 : index
    %c0_13 = arith.constant 0 : index
    %24 = vector.load %arg5[%c0_12, %c0_13] : memref<128x128xf32, #tpu.memory_space<vmem>>, vector<128x128xf32>
    tpu.vector_store %arg5[%c0_12, %c0_13], %23 {strides = array<i32>} : memref<128x128xf32, #tpu.memory_space<vmem>>, vector<128x128xf32>,
    %25 = vector.broadcast %17 : vector<128x1xf32> to vector<128x128xf32>
    %26 = arith.mulf %1, %25 : vector<128x128xf32>
    %27 = vector.broadcast %19 : vector<1x128xf32> to vector<128x128xf32>
    %28 = arith.mulf %26, %27 : vector<128x128xf32>
    %c0_14 = arith.constant 0 : index
    %c0_15 = arith.constant 0 : index
    %29 = vector.load %arg6[%c0_14, %c0_15] : memref<128x128xf32, #tpu.memory_space<vmem>>, vector<128x128xf32>
    tpu.vector_store %arg6[%c0_14, %c0_15], %28 {strides = array<i32>} : memref<128x128xf32, #tpu.memory_space<vmem>>, vector<128x128xf32>,
    return
  }
  func.func @transform_0(%arg0: i32) -> (i32, i32) {
    %c0_i32 = arith.constant 0 : i32
    %c0_i32_0 = arith.constant 0 : i32
    return %arg0, %c0_i32 : i32, i32
  }
  func.func @transform_1(%arg0: i32) -> (i32, i32) {
    %c0_i32 = arith.constant 0 : i32
    %c0_i32_0 = arith.constant 0 : i32
    return %arg0, %c0_i32 : i32, i32
  }
  func.func @transform_2(%arg0: i32) -> (i32, i32) {
    %c0_i32 = arith.constant 0 : i32
    %c0_i32_0 = arith.constant 0 : i32
    %c0_i32_1 = arith.constant 0 : i32
    return %c0_i32, %c0_i32_0 : i32, i32
  }
  func.func @transform_3(%arg0: i32) -> (i32, i32) {
    %c0_i32 = arith.constant 0 : i32
    %c0_i32_0 = arith.constant 0 : i32
    %c0_i32_1 = arith.constant 0 : i32
    return %c0_i32, %c0_i32_0 : i32, i32
  }
  func.func @transform_4(%arg0: i32) -> (i32, i32) {
    %c0_i32 = arith.constant 0 : i32
    %c0_i32_0 = arith.constant 0 : i32
    return %arg0, %c0_i32 : i32, i32
  }
  func.func @transform_5(%arg0: i32) -> (i32, i32) {
    %c0_i32 = arith.constant 0 : i32
    %c0_i32_0 = arith.constant 0 : i32
    return %arg0, %c0_i32 : i32, i32
  }
}

</mosaic_0001>

<llo_original>
// kernel: tpu_custom_call.1
$region0: #{tpu_custom_call.1}
  #allocation0 [shape = 'u32[]', space=smem, size = 0x4, offset = 0x4, fixed_abs, tag = 'smem constant byte address 0x4 - core index']
  #allocation1 [shape = 'u32[144,128]{1,0:T(1,128)}', space=vmem, size = 0x12000, scoped, tag = 'internal scratch']
  %s0 = inlined_call_operand.hbm [shape: f32[256,128], index: 0, kind: input, shape index: {}]
  %s1 = inlined_call_operand.hbm [shape: f32[256,128], index: 1, kind: input, shape index: {}]
  %s2 = inlined_call_operand.vmem [shape: f32[1,128], index: 2, kind: input, shape index: {}]
  %s3 = inlined_call_operand.vmem [shape: f32[1,128], index: 3, kind: input, shape index: {}]
  %s4 = inlined_call_operand.hbm [shape: f32[256,128], index: 4, kind: output, shape index: {0}]
  %s5 = inlined_call_operand.hbm [shape: f32[256,128], index: 5, kind: output, shape index: {1}]
  %6 = xla_tuple %s4, %s5
  %s7 = sld [smem:[#allocation0]]
  $region65: #{tpu_custom_call.1} parent=0
    _
  %s9 = ssub.s32 1, %s7
  %s10 = scalar_select 0, %s9, %s7
  $region1: #{tpu_custom_call.1} parent=0
    #allocation2 [shape = 'u8[131072]{0}', space=vmem, size = 0x20000, scoped, tag = 'input window, operand 0']
    #allocation3 [shape = 's32[2]{0}', space=sflag, size = 0x8, scoped, tag = 'scoped memory for tpu_custom_call.1']
    #allocation4 [shape = 's32[2]{0}', space=sflag, size = 0x8, scoped, tag = 'scoped memory for tpu_custom_call.1']
    #allocation5 [shape = 'u8[131072]{0}', space=vmem, size = 0x20000, scoped, tag = 'input window, operand 1']
    #allocation6 [shape = 's32[2]{0}', space=sflag, size = 0x8, scoped, tag = 'scoped memory for tpu_custom_call.1']
    #allocation7 [shape = 'u8[131072]{0}', space=vmem, size = 0x20000, scoped, tag = 'output window, operand 0']
    #allocation8 [shape = 'u8[131072]{0}', space=vmem, size = 0x20000, scoped, tag = 'output window, operand 1']
    #allocation9 [shape = 's32[2]{0}', space=sflag, size = 0x8, scoped, tag = 'scoped memory for tpu_custom_call.1']
    %11 = vsyncpa [#allocation3], 0
    %s12 = scalar_lea.sflag [#allocation3], 1
    %13 = vsyncpa %s12, 0
    %14 = vsyncpa [#allocation6], 0
    %s15 = scalar_lea.sflag [#allocation6], 1
    %16 = vsyncpa %s15, 0
    %17 = vsyncpa [#allocation4], 0
    %s18 = scalar_lea.sflag [#allocation4], 1
    %19 = vsyncpa %s18, 0
    %20 = vsyncpa [#allocation9], 0
    %s21 = scalar_lea.sflag [#allocation9], 1
    %22 = vsyncpa %s21, 0
    loop: start=0, step=1, limit=4
    $region2: #{tpu_custom_call.1} parent=1 // loop_pre_header
      _
    $region3: #{tpu_custom_call.1} parent=1 // loop_header
      %s24 = sphi 0, %s28
      %p25 = scmp.ge.s32.totalorder %s24, 4
      %s34 = sphi 0, %s36
      %s37 = sphi 0, %s34
      %s38 = sphi 0, %s37
      %s54 = sphi 0, %s38
      %s60 = sphi 0, %s62
      %s63 = sphi 0, %s60
      %s64 = sphi 0, %s63
      %s80 = sphi 0, %s64
      %s84 = sphi 0, %s84
      %s86 = sphi 0, %s84
      %s87 = sphi 0, %s86
      %s101 = sphi 0, %s87
      %s105 = sphi 0, %s105
      %s107 = sphi 0, %s105
      %s108 = sphi 0, %s107
      %s122 = sphi 0, %s108
      %s128 = sphi 0, %s130
      %s131 = sphi 0, %s128
      %s132 = sphi 0, %s131
      %s148 = sphi 0, %s132
      %s154 = sphi 0, %s156
      %s157 = sphi 0, %s154
      %s158 = sphi 0, %s157
      %s174 = sphi 0, %s158
    $region4: #{tpu_custom_call.1} parent=1 // loop_header_branch
      %27 = sbr.rel (%p25) target = $region8
    $region5: #{tpu_custom_call.1} parent=1 // loop_body
      %s29 = ssub.s32 %s24, 1
      %s30 = ssub.s32 %s24, 2
      %s31 = sadd.s32 %s24, 1
      %s32 = ssub.s32 %s24, %s31
      %p33 = scmp.eq.s32.totalorder %s32, 0
      %s35 = sadd.s32 %s34, 1
      %s36 = scalar_select %p33, %s34, %s35
      %p39 = pneg %p33
      %p40 = scmp.eq.s32.totalorder %s24, 1
      %p41 = por %p39, %p40
      %p42 = scmp.ne.s32.totalorder %s34, %s37
      %p43 = scmp.eq.s32.totalorder %s24, 0
      %p44 = por %p42, %p43
      %p45 = scmp.ne.s32.totalorder %s34, %s37
      %p46 = scmp.eq.s32.totalorder %s29, 1
      %p47 = por %p45, %p46
      %p48 = scmp.ne.s32.totalorder %s37, %s38
      %p49 = scmp.eq.s32.totalorder %s29, 0
      %p50 = por %p48, %p49
      %p51 = scmp.ne.s32.totalorder %s37, %s38
      %p52 = scmp.eq.s32.totalorder %s30, 1
      %p53 = por %p51, %p52
      %p55 = scmp.ne.s32.totalorder %s38, %s54
      %p56 = scmp.eq.s32.totalorder %s30, 0
      %p57 = por %p55, %p56
      %s58 = ssub.s32 %s24, %s31
      %p59 = scmp.eq.s32.totalorder %s58, 0
      %s61 = sadd.s32 %s60, 1
      %s62 = scalar_select %p59, %s60, %s61
      %p65 = pneg %p59
      %p66 = scmp.eq.s32.totalorder %s24, 1
      %p67 = por %p65, %p66
      %p68 = scmp.ne.s32.totalorder %s60, %s63
      %p69 = scmp.eq.s32.totalorder %s24, 0
      %p70 = por %p68, %p69
      %p71 = scmp.ne.s32.totalorder %s60, %s63
      %p72 = scmp.eq.s32.totalorder %s29, 1
      %p73 = por %p71, %p72
      %p74 = scmp.ne.s32.totalorder %s63, %s64
      %p75 = scmp.eq.s32.totalorder %s29, 0
      %p76 = por %p74, %p75
      %p77 = scmp.ne.s32.totalorder %s63, %s64
      %p78 = scmp.eq.s32.totalorder %s30, 1
      %p79 = por %p77, %p78
      %p81 = scmp.ne.s32.totalorder %s64, %s80
      %p82 = scmp.eq.s32.totalorder %s30, 0
      %p83 = por %p81, %p82
      %s85 = sadd.s32 %s84, 1
      %p88 = scmp.eq.s32.totalorder %s24, 1
      %p89 = scmp.ne.s32.totalorder %s84, %s86
      %p90 = scmp.eq.s32.totalorder %s24, 0
      %p91 = por %p89, %p90
      %p92 = scmp.ne.s32.totalorder %s84, %s86
      %p93 = scmp.eq.s32.totalorder %s29, 1
      %p94 = por %p92, %p93
      %p95 = scmp.ne.s32.totalorder %s86, %s87
      %p96 = scmp.eq.s32.totalorder %s29, 0
      %p97 = por %p95, %p96
      %p98 = scmp.ne.s32.totalorder %s86, %s87
      %p99 = scmp.eq.s32.totalorder %s30, 1
      %p100 = por %p98, %p99
      %p102 = scmp.ne.s32.totalorder %s87, %s101
      %p103 = scmp.eq.s32.totalorder %s30, 0
      %p104 = por %p102, %p103
      %s106 = sadd.s32 %s105, 1
      %p109 = scmp.eq.s32.totalorder %s24, 1
      %p110 = scmp.ne.s32.totalorder %s105, %s107
      %p111 = scmp.eq.s32.totalorder %s24, 0
      %p112 = por %p110, %p111
      %p113 = scmp.ne.s32.totalorder %s105, %s107
      %p114 = scmp.eq.s32.totalorder %s29, 1
      %p115 = por %p113, %p114
      %p116 = scmp.ne.s32.totalorder %s107, %s108
      %p117 = scmp.eq.s32.totalorder %s29, 0
      %p118 = por %p116, %p117
      %p119 = scmp.ne.s32.totalorder %s107, %s108
      %p120 = scmp.eq.s32.totalorder %s30, 1
      %p121 = por %p119, %p120
      %p123 = scmp.ne.s32.totalorder %s108, %s122
      %p124 = scmp.eq.s32.totalorder %s30, 0
      %p125 = por %p123, %p124
      %s126 = ssub.s32 %s24, %s31
      %p127 = scmp.eq.s32.totalorder %s126, 0
      %s129 = sadd.s32 %s128, 1
      %s130 = scalar_select %p127, %s128, %s129
      %p133 = pneg %p127
      %p134 = scmp.eq.s32.totalorder %s24, 1
      %p135 = por %p133, %p134
      %p136 = scmp.ne.s32.totalorder %s128, %s131
      %p137 = scmp.eq.s32.totalorder %s24, 0
      %p138 = por %p136, %p137
      %p139 = scmp.ne.s32.totalorder %s128, %s131
      %p140 = scmp.eq.s32.totalorder %s29, 1
      %p141 = por %p139, %p140
      %p142 = scmp.ne.s32.totalorder %s131, %s132
      %p143 = scmp.eq.s32.totalorder %s29, 0
      %p144 = por %p142, %p143
      %p145 = scmp.ne.s32.totalorder %s131, %s132
      %p146 = scmp.eq.s32.totalorder %s30, 1
      %p147 = por %p145, %p146
      %p149 = scmp.ne.s32.totalorder %s132, %s148
      %p150 = scmp.eq.s32.totalorder %s30, 0
      %p151 = por %p149, %p150
      %s152 = ssub.s32 %s24, %s31
      %p153 = scmp.eq.s32.totalorder %s152, 0
      %s155 = sadd.s32 %s154, 1
      %s156 = scalar_select %p153, %s154, %s155
      %p159 = pneg %p153
      %p160 = scmp.eq.s32.totalorder %s24, 1
      %p161 = por %p159, %p160
      %p162 = scmp.ne.s32.totalorder %s154, %s157
      %p163 = scmp.eq.s32.totalorder %s24, 0
      %p164 = por %p162, %p163
      %p165 = scmp.ne.s32.totalorder %s154, %s157
      %p166 = scmp.eq.s32.totalorder %s29, 1
      %p167 = por %p165, %p166
      %p168 = scmp.ne.s32.totalorder %s157, %s158
      %p169 = scmp.eq.s32.totalorder %s29, 0
      %p170 = por %p168, %p169
      %p171 = scmp.ne.s32.totalorder %s157, %s158
      %p172 = scmp.eq.s32.totalorder %s30, 1
      %p173 = por %p171, %p172
      %p175 = scmp.ne.s32.totalorder %s158, %s174
      %p176 = scmp.eq.s32.totalorder %s30, 0
      %p177 = por %p175, %p176
      %p178 = scmp.le.s32.totalorder 1, %s24
      %p179 = scmp.lt.s32.totalorder %s24, 3
      %p180 = pnand %p178, %p179
      %p181 = pneg %p180
      // Predicated region
      $region9: #{tpu_custom_call.1} parent=5 // pred_check
        _
      $region10: #{tpu_custom_call.1} parent=5 // pred_check_branch
        %183 = sbr.rel (%p180) target = $region12
      $region11: #{tpu_custom_call.1} parent=5 // pred_region
        %s184 = ssub.s32 %s24, 1
        // Predicated region
        $region13: #{tpu_custom_call.1} parent=11 // pred_check
          %p185 = pneg %p97
        $region14: #{tpu_custom_call.1} parent=11 // pred_check_branch
          %187 = sbr.rel (%p185) target = $region16
        $region15: #{tpu_custom_call.1} parent=11 // pred_region
          _
        $region16: #{tpu_custom_call.1} parent=11 // pred_fallthru
          _
        // Predicated region
        $region17: #{tpu_custom_call.1} parent=11 // pred_check
          %p188 = pneg %p118
        $region18: #{tpu_custom_call.1} parent=11 // pred_check_branch
          %190 = sbr.rel (%p188) target = $region20
        $region19: #{tpu_custom_call.1} parent=11 // pred_region
          _
        $region20: #{tpu_custom_call.1} parent=11 // pred_fallthru
          _
      $region12: #{tpu_custom_call.1} parent=5 // pred_fallthru
        _
      %p191 = scmp.lt.s32.totalorder %s24, 2
      // Predicated region
      $region21: #{tpu_custom_call.1} parent=5 // pred_check
        %p192 = pneg %p191
      $region22: #{tpu_custom_call.1} parent=5 // pred_check_branch
        %194 = sbr.rel (%p192) target = $region24
      $region23: #{tpu_custom_call.1} parent=5 // pred_region
        // Predicated region
        $region25: #{tpu_custom_call.1} parent=23 // pred_check
          %p195 = pneg %p44
        $region26: #{tpu_custom_call.1} parent=23 // pred_check_branch
          %197 = sbr.rel (%p195) target = $region28
        $region27: #{tpu_custom_call.1} parent=23 // pred_region
          %s198 = sand.u32 %s34, 1
          %s199 = scalar_lea.sflag [#allocation3], %s198
          %s200 = sand.u32 %s34, 1
          %s201 = smul.addr %s200, 128
          %s202 = scalar_lea.vmem [#allocation2], %s201
          %s203 = smul.u32 16, %s24
          %s205 = ssub.s32 2048, 2048
          %206 = vsyncadd %s199, %s205
          %s207 = smul.addr %s203, 128
          %s208 = scalar_lea.hbm %s0, %s207
          %s209 = sshll.u32 %s202, 4
          %s210 = int_to_ptr.vmem [resolvable:$true] %s209
          %215 = dma.hbm_to_vmem [thread:$0]  %s208, 2048, %s210, %s199, 128, 128, 8
        $region28: #{tpu_custom_call.1} parent=23 // pred_fallthru
          _
        // Predicated region
        $region29: #{tpu_custom_call.1} parent=23 // pred_check
          %p216 = pneg %p70
        $region30: #{tpu_custom_call.1} parent=23 // pred_check_branch
          %218 = sbr.rel (%p216) target = $region32
        $region31: #{tpu_custom_call.1} parent=23 // pred_region
          %s219 = sand.u32 %s60, 1
          %s220 = scalar_lea.sflag [#allocation6], %s219
          %s221 = sand.u32 %s60, 1
          %s222 = smul.addr %s221, 128
          %s223 = scalar_lea.vmem [#allocation5], %s222
          %s224 = smul.u32 16, %s24
          %s226 = ssub.s32 2048, 2048
          %227 = vsyncadd %s220, %s226
          %s228 = smul.addr %s224, 128
          %s229 = scalar_lea.hbm %s1, %s228
          %s230 = sshll.u32 %s223, 4
          %s231 = int_to_ptr.vmem [resolvable:$true] %s230
          %236 = dma.hbm_to_vmem [thread:$0]  %s229, 2048, %s231, %s220, 128, 128, 8
        $region32: #{tpu_custom_call.1} parent=23 // pred_fallthru
          _
      $region24: #{tpu_custom_call.1} parent=5 // pred_fallthru
        _
      %p237 = scmp.le.s32.totalorder 1, %s24
      %p238 = scmp.lt.s32.totalorder %s24, 3
      %p239 = pnand %p237, %p238
      %p240 = pneg %p239
      // Predicated region
      $region33: #{tpu_custom_call.1} parent=5 // pred_check
        _
      $region34: #{tpu_custom_call.1} parent=5 // pred_check_branch
        %242 = sbr.rel (%p239) target = $region36
      $region35: #{tpu_custom_call.1} parent=5 // pred_region
        %s243 = ssub.s32 %s24, 1
        %s244 = sand.u32 %s37, 1
        %s245 = scalar_lea.sflag [#allocation3], %s244
        %s246 = sand.u32 %s37, 1
        %s247 = smul.addr %s246, 128
        %s248 = scalar_lea.vmem [#allocation2], %s247
        // Predicated region
        $region37: #{tpu_custom_call.1} parent=35 // pred_check
          %p249 = pneg %p50
        $region38: #{tpu_custom_call.1} parent=35 // pred_check_branch
          %251 = sbr.rel (%p249) target = $region40
        $region39: #{tpu_custom_call.1} parent=35 // pred_region
          %252 = dma.done %s245, 2048
        $region40: #{tpu_custom_call.1} parent=35 // pred_fallthru
          _
        %s253 = sand.u32 %s63, 1
        %s254 = scalar_lea.sflag [#allocation6], %s253
        %s255 = sand.u32 %s63, 1
        %s256 = smul.addr %s255, 128
        %s257 = scalar_lea.vmem [#allocation5], %s256
        // Predicated region
        $region41: #{tpu_custom_call.1} parent=35 // pred_check
          %p258 = pneg %p76
        $region42: #{tpu_custom_call.1} parent=35 // pred_check_branch
          %260 = sbr.rel (%p258) target = $region44
        $region43: #{tpu_custom_call.1} parent=35 // pred_region
          %261 = dma.done %s254, 2048
        $region44: #{tpu_custom_call.1} parent=35 // pred_fallthru
          _
        %s262 = sand.u32 %s37, 1
        %s263 = scalar_lea.sflag [#allocation3], %s262
        %s264 = sand.u32 %s37, 1
        %s265 = smul.addr %s264, 128
        %s266 = scalar_lea.vmem [#allocation2], %s265
        %p267 = pneg %p50
        %p268 = pneg %p47
        %s269 = sand.u32 %s63, 1
        %s270 = scalar_lea.sflag [#allocation6], %s269
        %s271 = sand.u32 %s63, 1
        %s272 = smul.addr %s271, 128
        %s273 = scalar_lea.vmem [#allocation5], %s272
        %p274 = pneg %p76
        %p275 = pneg %p73
        %p276 = pneg %p97
        %p277 = pneg %p94
        %p278 = pneg %p118
        %p279 = pneg %p115
        %p280 = pneg %p144
        %p281 = pneg %p141
        %s282 = sand.u32 %s131, 1
        %s283 = scalar_lea.sflag [#allocation4], %s282
        %s284 = sand.u32 %s131, 1
        %s285 = smul.addr %s284, 128
        %s286 = scalar_lea.vmem [#allocation7], %s285
        %p287 = pneg %p170
        %p288 = pneg %p167
        %s289 = sand.u32 %s157, 1
        %s290 = scalar_lea.sflag [#allocation9], %s289
        %s291 = sand.u32 %s157, 1
        %s292 = smul.addr %s291, 128
        %s293 = scalar_lea.vmem [#allocation8], %s292
        %s294 = smul.u32 16, %s29
        %s295 = smul.u32 16, %s29
        %s296 = smul.u32 16, %s29
        %s297 = smul.u32 16, %s29
        %v298 = vld [vmem:[%s248] sm:$0xff]
        %v299 = vld [vmem:[%s248 + $0x8] sm:$0xff]
        %v300 = vld [vmem:[%s248 + $0x10] sm:$0xff]
        %v301 = vld [vmem:[%s248 + $0x18] sm:$0xff]
        %v302 = vld [vmem:[%s248 + $0x20] sm:$0xff]
        %v303 = vld [vmem:[%s248 + $0x28] sm:$0xff]
        %v304 = vld [vmem:[%s248 + $0x30] sm:$0xff]
        %v305 = vld [vmem:[%s248 + $0x38] sm:$0xff]
        %v306 = vld [vmem:[%s248 + $0x40] sm:$0xff]
        %v307 = vld [vmem:[%s248 + $0x48] sm:$0xff]
        %v308 = vld [vmem:[%s248 + $0x50] sm:$0xff]
        %v309 = vld [vmem:[%s248 + $0x58] sm:$0xff]
        %v310 = vld [vmem:[%s248 + $0x60] sm:$0xff]
        %v311 = vld [vmem:[%s248 + $0x68] sm:$0xff]
        %v312 = vld [vmem:[%s248 + $0x70] sm:$0xff]
        %v313 = vld [vmem:[%s248 + $0x78] sm:$0xff]
        %v314 = vld [vmem:[%s257] sm:$0xff]
        %v315 = vld [vmem:[%s257 + $0x8] sm:$0xff]
        %v316 = vld [vmem:[%s257 + $0x10] sm:$0xff]
        %v317 = vld [vmem:[%s257 + $0x18] sm:$0xff]
        %v318 = vld [vmem:[%s257 + $0x20] sm:$0xff]
        %v319 = vld [vmem:[%s257 + $0x28] sm:$0xff]
        %v320 = vld [vmem:[%s257 + $0x30] sm:$0xff]
        %v321 = vld [vmem:[%s257 + $0x38] sm:$0xff]
        %v322 = vld [vmem:[%s257 + $0x40] sm:$0xff]
        %v323 = vld [vmem:[%s257 + $0x48] sm:$0xff]
        %v324 = vld [vmem:[%s257 + $0x50] sm:$0xff]
        %v325 = vld [vmem:[%s257 + $0x58] sm:$0xff]
        %v326 = vld [vmem:[%s257 + $0x60] sm:$0xff]
        %v327 = vld [vmem:[%s257 + $0x68] sm:$0xff]
        %v328 = vld [vmem:[%s257 + $0x70] sm:$0xff]
        %v329 = vld [vmem:[%s257 + $0x78] sm:$0xff]
        %v330 = vmul.f32 %v298, %v298
        %v331 = vmul.f32 %v299, %v299
        %v332 = vmul.f32 %v300, %v300
        %v333 = vmul.f32 %v301, %v301
        %v334 = vmul.f32 %v302, %v302
        %v335 = vmul.f32 %v303, %v303
        %v336 = vmul.f32 %v304, %v304
        %v337 = vmul.f32 %v305, %v305
        %v338 = vmul.f32 %v306, %v306
        %v339 = vmul.f32 %v307, %v307
        %v340 = vmul.f32 %v308, %v308
        %v341 = vmul.f32 %v309, %v309
        %v342 = vmul.f32 %v310, %v310
        %v343 = vmul.f32 %v311, %v311
        %v344 = vmul.f32 %v312, %v312
        %v345 = vmul.f32 %v313, %v313
        %346 = vadd.xlane.f32.xlu0 %v330
        %v347 = vpop.xlane.xlu0 %346
        %348 = vadd.xlane.f32.xlu0 %v331
        %v349 = vpop.xlane.xlu0 %348
        %350 = vadd.xlane.f32.xlu0 %v332
        %v351 = vpop.xlane.xlu0 %350
        %352 = vadd.xlane.f32.xlu0 %v333
        %v353 = vpop.xlane.xlu0 %352
        %354 = vadd.xlane.f32.xlu0 %v334
        %v355 = vpop.xlane.xlu0 %354
        %356 = vadd.xlane.f32.xlu0 %v335
        %v357 = vpop.xlane.xlu0 %356
        %358 = vadd.xlane.f32.xlu0 %v336
        %v359 = vpop.xlane.xlu0 %358
        %360 = vadd.xlane.f32.xlu0 %v337
        %v361 = vpop.xlane.xlu0 %360
        %362 = vadd.xlane.f32.xlu0 %v338
        %v363 = vpop.xlane.xlu0 %362
        %364 = vadd.xlane.f32.xlu0 %v339
        %v365 = vpop.xlane.xlu0 %364
        %366 = vadd.xlane.f32.xlu0 %v340
        %v367 = vpop.xlane.xlu0 %366
        %368 = vadd.xlane.f32.xlu0 %v341
        %v369 = vpop.xlane.xlu0 %368
        %370 = vadd.xlane.f32.xlu0 %v342
        %v371 = vpop.xlane.xlu0 %370
        %372 = vadd.xlane.f32.xlu0 %v343
        %v373 = vpop.xlane.xlu0 %372
        %374 = vadd.xlane.f32.xlu0 %v344
        %v375 = vpop.xlane.xlu0 %374
        %376 = vadd.xlane.f32.xlu0 %v345
        %v377 = vpop.xlane.xlu0 %376
        %v378 = vrcp.pop 128.0
        %v379 = vmul.f32 %v347, %v378
        %v380 = vmul.f32 %v349, %v378
        %v381 = vmul.f32 %v351, %v378
        %v382 = vmul.f32 %v353, %v378
        %v383 = vmul.f32 %v355, %v378
        %v384 = vmul.f32 %v357, %v378
        %v385 = vmul.f32 %v359, %v378
        %v386 = vmul.f32 %v361, %v378
        %v387 = vmul.f32 %v363, %v378
        %v388 = vmul.f32 %v365, %v378
        %v389 = vmul.f32 %v367, %v378
        %v390 = vmul.f32 %v369, %v378
        %v391 = vmul.f32 %v371, %v378
        %v392 = vmul.f32 %v373, %v378
        %v393 = vmul.f32 %v375, %v378
        %v394 = vmul.f32 %v377, %v378
        %v395 = vadd.f32 %v379, 1e-06
        %v396 = vadd.f32 %v380, 1e-06
        %v397 = vadd.f32 %v381, 1e-06
        %v398 = vadd.f32 %v382, 1e-06
        %v399 = vadd.f32 %v383, 1e-06
        %v400 = vadd.f32 %v384, 1e-06
        %v401 = vadd.f32 %v385, 1e-06
        %v402 = vadd.f32 %v386, 1e-06
        %v403 = vadd.f32 %v387, 1e-06
        %v404 = vadd.f32 %v388, 1e-06
        %v405 = vadd.f32 %v389, 1e-06
        %v406 = vadd.f32 %v390, 1e-06
        %v407 = vadd.f32 %v391, 1e-06
        %v408 = vadd.f32 %v392, 1e-06
        %v409 = vadd.f32 %v393, 1e-06
        %v410 = vadd.f32 %v394, 1e-06
        %v411 = vrsqrt.pop %v395
        %v412 = vrsqrt.pop %v396
        %v413 = vrsqrt.pop %v397
        %v414 = vrsqrt.pop %v398
        %v415 = vrsqrt.pop %v399
        %v416 = vrsqrt.pop %v400
        %v417 = vrsqrt.pop %v401
        %v418 = vrsqrt.pop %v402
        %v419 = vrsqrt.pop %v403
        %v420 = vrsqrt.pop %v404
        %v421 = vrsqrt.pop %v405
        %v422 = vrsqrt.pop %v406
        %v423 = vrsqrt.pop %v407
        %v424 = vrsqrt.pop %v408
        %v425 = vrsqrt.pop %v409
        %v426 = vrsqrt.pop %v410
        %v427 = vmul.f32 %v314, %v314
        %v428 = vmul.f32 %v315, %v315
        %v429 = vmul.f32 %v316, %v316
        %v430 = vmul.f32 %v317, %v317
        %v431 = vmul.f32 %v318, %v318
        %v432 = vmul.f32 %v319, %v319
        %v433 = vmul.f32 %v320, %v320
        %v434 = vmul.f32 %v321, %v321
        %v435 = vmul.f32 %v322, %v322
        %v436 = vmul.f32 %v323, %v323
        %v437 = vmul.f32 %v324, %v324
        %v438 = vmul.f32 %v325, %v325
        %v439 = vmul.f32 %v326, %v326
        %v440 = vmul.f32 %v327, %v327
        %v441 = vmul.f32 %v328, %v328
        %v442 = vmul.f32 %v329, %v329
        %443 = vadd.xlane.f32.xlu0 %v427
        %v444 = vpop.xlane.xlu0 %443
        %445 = vadd.xlane.f32.xlu0 %v428
        %v446 = vpop.xlane.xlu0 %445
        %447 = vadd.xlane.f32.xlu0 %v429
        %v448 = vpop.xlane.xlu0 %447
        %449 = vadd.xlane.f32.xlu0 %v430
        %v450 = vpop.xlane.xlu0 %449
        %451 = vadd.xlane.f32.xlu0 %v431
        %v452 = vpop.xlane.xlu0 %451
        %453 = vadd.xlane.f32.xlu0 %v432
        %v454 = vpop.xlane.xlu0 %453
        %455 = vadd.xlane.f32.xlu0 %v433
        %v456 = vpop.xlane.xlu0 %455
        %457 = vadd.xlane.f32.xlu0 %v434
        %v458 = vpop.xlane.xlu0 %457
        %459 = vadd.xlane.f32.xlu0 %v435
        %v460 = vpop.xlane.xlu0 %459
        %461 = vadd.xlane.f32.xlu0 %v436
        %v462 = vpop.xlane.xlu0 %461
        %463 = vadd.xlane.f32.xlu0 %v437
        %v464 = vpop.xlane.xlu0 %463
        %465 = vadd.xlane.f32.xlu0 %v438
        %v466 = vpop.xlane.xlu0 %465
        %467 = vadd.xlane.f32.xlu0 %v439
        %v468 = vpop.xlane.xlu0 %467
        %469 = vadd.xlane.f32.xlu0 %v440
        %v470 = vpop.xlane.xlu0 %469
        %471 = vadd.xlane.f32.xlu0 %v441
        %v472 = vpop.xlane.xlu0 %471
        %473 = vadd.xlane.f32.xlu0 %v442
        %v474 = vpop.xlane.xlu0 %473
        %v475 = vmul.f32 %v444, %v378
        %v476 = vmul.f32 %v446, %v378
        %v477 = vmul.f32 %v448, %v378
        %v478 = vmul.f32 %v450, %v378
        %v479 = vmul.f32 %v452, %v378
        %v480 = vmul.f32 %v454, %v378
        %v481 = vmul.f32 %v456, %v378
        %v482 = vmul.f32 %v458, %v378
        %v483 = vmul.f32 %v460, %v378
        %v484 = vmul.f32 %v462, %v378
        %v485 = vmul.f32 %v464, %v378
        %v486 = vmul.f32 %v466, %v378
        %v487 = vmul.f32 %v468, %v378
        %v488 = vmul.f32 %v470, %v378
        %v489 = vmul.f32 %v472, %v378
        %v490 = vmul.f32 %v474, %v378
        %v491 = vadd.f32 %v475, 1e-06
        %v492 = vadd.f32 %v476, 1e-06
        %v493 = vadd.f32 %v477, 1e-06
        %v494 = vadd.f32 %v478, 1e-06
        %v495 = vadd.f32 %v479, 1e-06
        %v496 = vadd.f32 %v480, 1e-06
        %v497 = vadd.f32 %v481, 1e-06
        %v498 = vadd.f32 %v482, 1e-06
        %v499 = vadd.f32 %v483, 1e-06
        %v500 = vadd.f32 %v484, 1e-06
        %v501 = vadd.f32 %v485, 1e-06
        %v502 = vadd.f32 %v486, 1e-06
        %v503 = vadd.f32 %v487, 1e-06
        %v504 = vadd.f32 %v488, 1e-06
        %v505 = vadd.f32 %v489, 1e-06
        %v506 = vadd.f32 %v490, 1e-06
        %v507 = vrsqrt.pop %v491
        %v508 = vrsqrt.pop %v492
        %v509 = vrsqrt.pop %v493
        %v510 = vrsqrt.pop %v494
        %v511 = vrsqrt.pop %v495
        %v512 = vrsqrt.pop %v496
        %v513 = vrsqrt.pop %v497
        %v514 = vrsqrt.pop %v498
        %v515 = vrsqrt.pop %v499
        %v516 = vrsqrt.pop %v500
        %v517 = vrsqrt.pop %v501
        %v518 = vrsqrt.pop %v502
        %v519 = vrsqrt.pop %v503
        %v520 = vrsqrt.pop %v504
        %v521 = vrsqrt.pop %v505
        %v522 = vrsqrt.pop %v506
        %v523 = vld [vmem:[%s2] sm:$0x1]
        %v524 = vld [vmem:[%s3] sm:$0x1]
        %v525 = vmul.f32 %v298, %v411
        %v526 = vmul.f32 %v299, %v412
        %v527 = vmul.f32 %v300, %v413
        %v528 = vmul.f32 %v301, %v414
        %v529 = vmul.f32 %v302, %v415
        %v530 = vmul.f32 %v303, %v416
        %v531 = vmul.f32 %v304, %v417
        %v532 = vmul.f32 %v305, %v418
        %v533 = vmul.f32 %v306, %v419
        %v534 = vmul.f32 %v307, %v420
        %v535 = vmul.f32 %v308, %v421
        %v536 = vmul.f32 %v309, %v422
        %v537 = vmul.f32 %v310, %v423
        %v538 = vmul.f32 %v311, %v424
        %v539 = vmul.f32 %v312, %v425
        %v540 = vmul.f32 %v313, %v426
        %v542 = vlaneseq
        %v543 = vshrl.u32 %v542, 7
        %v544 = vsub.s32 0, %v543
        %v545 = vrot.slane %v523, %v544
        %v547 = vmul.f32 %v525, %v545
        %v548 = vmul.f32 %v526, %v545
        %v549 = vmul.f32 %v527, %v545
        %v550 = vmul.f32 %v528, %v545
        %v551 = vmul.f32 %v529, %v545
        %v552 = vmul.f32 %v530, %v545
        %v553 = vmul.f32 %v531, %v545
        %v554 = vmul.f32 %v532, %v545
        %v555 = vmul.f32 %v533, %v545
        %v556 = vmul.f32 %v534, %v545
        %v557 = vmul.f32 %v535, %v545
        %v558 = vmul.f32 %v536, %v545
        %v559 = vmul.f32 %v537, %v545
        %v560 = vmul.f32 %v538, %v545
        %v561 = vmul.f32 %v539, %v545
        %v562 = vmul.f32 %v540, %v545
        %563 = vst [vmem:[%s286] sm:$0xff] %v547
        %564 = vst [vmem:[%s286 + $0x8] sm:$0xff] %v548
        %565 = vst [vmem:[%s286 + $0x10] sm:$0xff] %v549
        %566 = vst [vmem:[%s286 + $0x18] sm:$0xff] %v550
        %567 = vst [vmem:[%s286 + $0x20] sm:$0xff] %v551
        %568 = vst [vmem:[%s286 + $0x28] sm:$0xff] %v552
        %569 = vst [vmem:[%s286 + $0x30] sm:$0xff] %v553
        %570 = vst [vmem:[%s286 + $0x38] sm:$0xff] %v554
        %571 = vst [vmem:[%s286 + $0x40] sm:$0xff] %v555
        %572 = vst [vmem:[%s286 + $0x48] sm:$0xff] %v556
        %573 = vst [vmem:[%s286 + $0x50] sm:$0xff] %v557
        %574 = vst [vmem:[%s286 + $0x58] sm:$0xff] %v558
        %575 = vst [vmem:[%s286 + $0x60] sm:$0xff] %v559
        %576 = vst [vmem:[%s286 + $0x68] sm:$0xff] %v560
        %577 = vst [vmem:[%s286 + $0x70] sm:$0xff] %v561
        %578 = vst [vmem:[%s286 + $0x78] sm:$0xff] %v562
        %v579 = vmul.f32 %v314, %v507
        %v580 = vmul.f32 %v315, %v508
        %v581 = vmul.f32 %v316, %v509
        %v582 = vmul.f32 %v317, %v510
        %v583 = vmul.f32 %v318, %v511
        %v584 = vmul.f32 %v319, %v512
        %v585 = vmul.f32 %v320, %v513
        %v586 = vmul.f32 %v321, %v514
        %v587 = vmul.f32 %v322, %v515
        %v588 = vmul.f32 %v323, %v516
        %v589 = vmul.f32 %v324, %v517
        %v590 = vmul.f32 %v325, %v518
        %v591 = vmul.f32 %v326, %v519
        %v592 = vmul.f32 %v327, %v520
        %v593 = vmul.f32 %v328, %v521
        %v594 = vmul.f32 %v329, %v522
        %v596 = vlaneseq
        %v597 = vshrl.u32 %v596, 7
        %v598 = vsub.s32 0, %v597
        %v599 = vrot.slane %v524, %v598
        %v601 = vmul.f32 %v579, %v599
        %v602 = vmul.f32 %v580, %v599
        %v603 = vmul.f32 %v581, %v599
        %v604 = vmul.f32 %v582, %v599
        %v605 = vmul.f32 %v583, %v599
        %v606 = vmul.f32 %v584, %v599
        %v607 = vmul.f32 %v585, %v599
        %v608 = vmul.f32 %v586, %v599
        %v609 = vmul.f32 %v587, %v599
        %v610 = vmul.f32 %v588, %v599
        %v611 = vmul.f32 %v589, %v599
        %v612 = vmul.f32 %v590, %v599
        %v613 = vmul.f32 %v591, %v599
        %v614 = vmul.f32 %v592, %v599
        %v615 = vmul.f32 %v593, %v599
        %v616 = vmul.f32 %v594, %v599
        %617 = vst [vmem:[%s293] sm:$0xff] %v601
        %618 = vst [vmem:[%s293 + $0x8] sm:$0xff] %v602
        %619 = vst [vmem:[%s293 + $0x10] sm:$0xff] %v603
        %620 = vst [vmem:[%s293 + $0x18] sm:$0xff] %v604
        %621 = vst [vmem:[%s293 + $0x20] sm:$0xff] %v605
        %622 = vst [vmem:[%s293 + $0x28] sm:$0xff] %v606
        %623 = vst [vmem:[%s293 + $0x30] sm:$0xff] %v607
        %624 = vst [vmem:[%s293 + $0x38] sm:$0xff] %v608
        %625 = vst [vmem:[%s293 + $0x40] sm:$0xff] %v609
        %626 = vst [vmem:[%s293 + $0x48] sm:$0xff] %v610
        %627 = vst [vmem:[%s293 + $0x50] sm:$0xff] %v611
        %628 = vst [vmem:[%s293 + $0x58] sm:$0xff] %v612
        %629 = vst [vmem:[%s293 + $0x60] sm:$0xff] %v613
        %630 = vst [vmem:[%s293 + $0x68] sm:$0xff] %v614
        %631 = vst [vmem:[%s293 + $0x70] sm:$0xff] %v615
        %632 = vst [vmem:[%s293 + $0x78] sm:$0xff] %v616
        %s633 = sand.u32 %s131, 1
        %s634 = scalar_lea.sflag [#allocation4], %s633
        %s635 = sand.u32 %s131, 1
        %s636 = smul.addr %s635, 128
        %s637 = scalar_lea.vmem [#allocation7], %s636
        %s638 = sand.u32 %s157, 1
        %s639 = scalar_lea.sflag [#allocation9], %s638
        %s640 = sand.u32 %s157, 1
        %s641 = smul.addr %s640, 128
        %s642 = scalar_lea.vmem [#allocation8], %s641
        // Predicated region
        $region45: #{tpu_custom_call.1} parent=35 // pred_check
          %p643 = pneg %p141
        $region46: #{tpu_custom_call.1} parent=35 // pred_check_branch
          %645 = sbr.rel (%p643) target = $region48
        $region47: #{tpu_custom_call.1} parent=35 // pred_region
          %s646 = smul.u32 16, %s29
          %s648 = ssub.s32 2048, 2048
          %649 = vsyncadd %s634, %s648
          %s650 = smul.addr %s646, 128
          %s651 = scalar_lea.hbm %s4, %s650
          %s652 = sshll.u32 %s637, 4
          %s653 = int_to_ptr.vmem [resolvable:$true] %s652
          %658 = dma.vmem_to_hbm [thread:$0]  %s653, 2048, %s651, %s634, 128, 128, 8
        $region48: #{tpu_custom_call.1} parent=35 // pred_fallthru
          _
        // Predicated region
        $region49: #{tpu_custom_call.1} parent=35 // pred_check
          %p659 = pneg %p167
        $region50: #{tpu_custom_call.1} parent=35 // pred_check_branch
          %661 = sbr.rel (%p659) target = $region52
        $region51: #{tpu_custom_call.1} parent=35 // pred_region
          %s662 = smul.u32 16, %s29
          %s664 = ssub.s32 2048, 2048
          %665 = vsyncadd %s639, %s664
          %s666 = smul.addr %s662, 128
          %s667 = scalar_lea.hbm %s5, %s666
          %s668 = sshll.u32 %s642, 4
          %s669 = int_to_ptr.vmem [resolvable:$true] %s668
          %674 = dma.vmem_to_hbm [thread:$0]  %s669, 2048, %s667, %s639, 128, 128, 8
        $region52: #{tpu_custom_call.1} parent=35 // pred_fallthru
          _
      $region36: #{tpu_custom_call.1} parent=5 // pred_fallthru
        _
      %p675 = scmp.le.s32.totalorder 2, %s24
      // Predicated region
      $region53: #{tpu_custom_call.1} parent=5 // pred_check
        %p676 = pneg %p675
      $region54: #{tpu_custom_call.1} parent=5 // pred_check_branch
        %678 = sbr.rel (%p676) target = $region56
      $region55: #{tpu_custom_call.1} parent=5 // pred_region
        %s679 = ssub.s32 %s24, 2
        // Predicated region
        $region57: #{tpu_custom_call.1} parent=55 // pred_check
          %p680 = pneg %p147
        $region58: #{tpu_custom_call.1} parent=55 // pred_check_branch
          %682 = sbr.rel (%p680) target = $region60
        $region59: #{tpu_custom_call.1} parent=55 // pred_region
          %s683 = sand.u32 %s132, 1
          %s684 = scalar_lea.sflag [#allocation4], %s683
          %s685 = sand.u32 %s132, 1
          %s686 = smul.addr %s685, 128
          %s687 = scalar_lea.vmem [#allocation7], %s686
          %688 = dma.done %s684, 2048
        $region60: #{tpu_custom_call.1} parent=55 // pred_fallthru
          _
        // Predicated region
        $region61: #{tpu_custom_call.1} parent=55 // pred_check
          %p689 = pneg %p173
        $region62: #{tpu_custom_call.1} parent=55 // pred_check_branch
          %691 = sbr.rel (%p689) target = $region64
        $region63: #{tpu_custom_call.1} parent=55 // pred_region
          %s692 = sand.u32 %s158, 1
          %s693 = scalar_lea.sflag [#allocation9], %s692
          %s694 = sand.u32 %s158, 1
          %s695 = smul.addr %s694, 128
          %s696 = scalar_lea.vmem [#allocation8], %s695
          %697 = dma.done %s693, 2048
        $region64: #{tpu_custom_call.1} parent=55 // pred_fallthru
          _
      $region56: #{tpu_custom_call.1} parent=5 // pred_fallthru
        _
    $region6: #{tpu_custom_call.1} parent=1 // loop_footer
      %s28 = sadd.s32 1, %s24
    $region7: #{tpu_custom_call.1} parent=1 // loop_footer_branch
      %23 = sbr.rel target = $region3
    $region8: #{tpu_custom_call.1} parent=1 // loop_exit
      _
    %698 = vsyncpa [#allocation3], 1
    %s699 = scalar_lea.sflag [#allocation3], 1
    %700 = vsyncpa %s699, 1
    %701 = vsyncpa [#allocation6], 1
    %s702 = scalar_lea.sflag [#allocation6], 1
    %703 = vsyncpa %s702, 1
    %704 = vsyncpa [#allocation4], 1
    %s705 = scalar_lea.sflag [#allocation4], 1
    %706 = vsyncpa %s705, 1
    %707 = vsyncpa [#allocation9], 1
    %s708 = scalar_lea.sflag [#allocation9], 1
    %709 = vsyncpa %s708, 1

</llo_original>
